<compile_context>
chip_gen: v6e
topology: v6e:2x2x1
jax: 0.10.0
libtpu: 0.0.40
codegen_flags: <defaults>
</compile_context>

<pallas_src>
import jax
import jax.numpy as jnp
from jax import lax
from jax.experimental import pallas as pl
from jax.experimental.pallas import tpu as pltpu

_EPS = 1e-5                          # nn.LayerNorm default
_VMEM_LIMIT = 48 * 1024 * 1024       # headroom under v7x's 64 MiB physical VMEM
_PER_BUFFER_BYTES = 8 * 1024 * 1024  # per pipelined buffer; 2 in + 2 out <= 32 MiB


def _pick_tile_rows(R, D, itemsize):
    """Largest row-tile that (a) keeps double-buffered tiles in budget,
    (b) is a multiple of 8 (sublane alignment), (c) divides R exactly
    (no masked partial stores).  Falls back to the full extent R."""
    per_row = max(1, D * itemsize)
    cap_rows = max(8, _PER_BUFFER_BYTES // per_row)
    tile = int(min(R, 2048, cap_rows))
    tile = max(8, (tile // 8) * 8)
    if tile >= R:
        return R
    while tile > 8 and R % tile != 0:
        tile -= 8
    if R % tile != 0:
        # TODO(synk): R not a multiple of 8 -- fall back to one full-R block
        # (fine for the shapes this module sees; revisit if R*D*4 > VMEM).
        return R
    return tile


def _ln_stats(x):
    # single pass: mean and E[x^2]; var clamped >= 0 against cancellation.
    s1 = jnp.mean(x, axis=-1, keepdims=True)
    s2 = jnp.mean(x * x, axis=-1, keepdims=True)
    var = jnp.maximum(s2 - s1 * s1, 0.0)
    return s1, lax.rsqrt(var + _EPS)


def _layernorm_kernel(x_ref, g_ref, b_ref, o_ref):
    # x_ref: (TILE_R, D);  g_ref/b_ref: (1, D)
    x = x_ref[...].astype(jnp.float32)
    g = g_ref[...].astype(jnp.float32)
    b = b_ref[...].astype(jnp.float32)
    mean, inv = _ln_stats(x)
    y = (x - mean) * inv * g + b
    o_ref[...] = y.astype(o_ref.dtype)


def _layernorm_mask_kernel(x_ref, m_ref, g_ref, b_ref, o_ref):
    # Fused elementwise epilogue: y * mask (mask broadcast over D).
    # x_ref: (TILE_R, D);  m_ref: (TILE_R, 1);  g_ref/b_ref: (1, D)
    x = x_ref[...].astype(jnp.float32)
    g = g_ref[...].astype(jnp.float32)
    b = b_ref[...].astype(jnp.float32)
    mean, inv = _ln_stats(x)
    y = (x - mean) * inv * g + b
    o_ref[...] = (y * m_ref[...].astype(jnp.float32)).astype(o_ref.dtype)


def _layernorm_impl(x, gamma, beta, mask=None):
    B, N, D = x.shape
    R = B * N
    x2 = x.reshape(R, D)                       # contiguous -> free view reshape
    tile_r = _pick_tile_rows(R, D, x.dtype.itemsize)
    grid = (R // tile_r,)

    row_spec = pl.BlockSpec((tile_r, D), lambda r: (r, 0))
    gb_spec = pl.BlockSpec((1, D), lambda r: (0, 0))

    args = [x2]
    in_specs = [row_spec]
    if mask is not None:
        m2 = mask.reshape(R, 1).astype(jnp.float32)
        in_specs.append(pl.BlockSpec((tile_r, 1), lambda r: (r, 0)))
        args.append(m2)
        kernel = _layernorm_mask_kernel
    else:
        kernel = _layernorm_kernel

    args += [gamma.reshape(1, D), beta.reshape(1, D)]
    in_specs += [gb_spec, gb_spec]

    out = pl.pallas_call(
        kernel,
        out_shape=jax.ShapeDtypeStruct((R, D), x.dtype),
        grid_spec=pl.GridSpec(
            grid=grid,
            in_specs=in_specs,
            out_specs=row_spec,
        ),
        compiler_params=pltpu.CompilerParams(
            dimension_semantics=("parallel",),
            vmem_limit_bytes=_VMEM_LIMIT,
        ),
    )(*args)
    return out.reshape(B, N, D)


def layernorm_pallas(x, gamma, beta):
    """LayerNorm over the last dim of (B, N, D)."""
    return _layernorm_impl(x, gamma, beta)


def pre_norm(x, mask, gamma, beta, fn=None):
    """PreNorm.forward: fn(LayerNorm(x), mask).

    fn=None selects the common elementwise epilogue fn(h, m) = h * m[..., None],
    fused into the kernel (saves a full HBM round trip over the (B, N, D)
    activations).  Any other callable (arbitrary sub-module) is applied
    outside the kernel on the normalized activations."""
    if fn is None:
        return _layernorm_impl(x, gamma, beta, mask=mask)
    return fn(layernorm_pallas(x, gamma, beta), mask)


if __name__ == "__main__":
    B, N, D = 2, 8, 128  # D multiple of 128 -> lane-dense output stores
    key = jax.random.PRNGKey(0)
    kx, km, kg, kb = jax.random.split(key, 4)

    x = jax.random.normal(kx, (B, N, D), dtype=jnp.float32)
    mask = (jax.random.uniform(km, (B, N)) > 0.3).astype(jnp.float32)
    gamma = 1.0 + 0.1 * jax.random.normal(kg, (D,), dtype=jnp.float32)
    beta = 0.1 * jax.random.normal(kb, (D,), dtype=jnp.float32)

    # example `fn`: simple mask-apply (the wrapped sub-module is arbitrary).
    fn = lambda h, m: h * m[..., None]

    # Fused-epilogue path (mask multiply inside the kernel).
    out_fused = jax.block_until_ready(pre_norm(x, mask, gamma, beta))
    # Generic path (arbitrary fn applied outside the kernel).
    out_generic = jax.block_until_ready(pre_norm(x, mask, gamma, beta, fn=fn))

    # pure-JAX reference
    mean = jnp.mean(x, axis=-1, keepdims=True)
    var = jnp.mean((x - mean) ** 2, axis=-1, keepdims=True)
    normed = (x - mean) / jnp.sqrt(var + _EPS) * gamma + beta
    ref = fn(normed, mask)

    assert jnp.allclose(out_fused, ref, atol=1e-4, rtol=1e-5), "fused path mismatch"
    assert jnp.allclose(out_generic, ref, atol=1e-4, rtol=1e-5), "generic path mismatch"

    print("KERNEL_OK")
</pallas_src>

<mosaic_0001>
module attributes {stable_mosaic.version = 11 : i64} {
  func.func @_layernorm_mask_kernel(%arg0: i32, %arg1: memref<16x128xf32, #tpu.memory_space<vmem>>, %arg2: memref<16x1xf32, #tpu.memory_space<vmem>>, %arg3: memref<1x128xf32, #tpu.memory_space<vmem>>, %arg4: memref<1x128xf32, #tpu.memory_space<vmem>>, %arg5: memref<16x128xf32, #tpu.memory_space<vmem>>) attributes {dimension_semantics = [#tpu.dimension_semantics<parallel>], iteration_bounds = array<i64: 1>, scalar_prefetch = 0 : i64, scratch_operands = 0 : i64, tpu.core_type = #tpu.core_type<tc>, window_params = [{transform_indices = @transform_0, window_bounds = array<i64: 16, 128>}, {transform_indices = @transform_1, window_bounds = array<i64: 16, 1>}, {pipeline_mode = #tpu.pipeline_mode<synchronous>, transform_indices = @transform_2, window_bounds = array<i64: 1, 128>}, {pipeline_mode = #tpu.pipeline_mode<synchronous>, transform_indices = @transform_3, window_bounds = array<i64: 1, 128>}, {transform_indices = @transform_4, window_bounds = array<i64: 16, 128>}]} {
    %c0 = arith.constant 0 : index
    %c0_0 = arith.constant 0 : index
    %0 = vector.load %arg1[%c0, %c0_0] : memref<16x128xf32, #tpu.memory_space<vmem>>, vector<16x128xf32>
    %c0_1 = arith.constant 0 : index
    %c0_2 = arith.constant 0 : index
    %1 = vector.load %arg3[%c0_1, %c0_2] : memref<1x128xf32, #tpu.memory_space<vmem>>, vector<1x128xf32>
    %c0_3 = arith.constant 0 : index
    %c0_4 = arith.constant 0 : index
    %2 = vector.load %arg4[%c0_3, %c0_4] : memref<1x128xf32, #tpu.memory_space<vmem>>, vector<1x128xf32>
    %cst = arith.constant dense<0.000000e+00> : vector<16xf32>
    %3 = vector.multi_reduction <add>, %0, %cst [1] : vector<16x128xf32> to vector<16xf32>
    %4 = vector.shape_cast %3 : vector<16xf32> to vector<16x1xf32>
    %cst_5 = arith.constant 1.280000e+02 : f32
    %5 = vector.broadcast %cst_5 : f32 to vector<16x1xf32>
    %6 = arith.divf %4, %5 : vector<16x1xf32>
    %7 = arith.mulf %0, %0 : vector<16x128xf32>
    %cst_6 = arith.constant dense<0.000000e+00> : vector<16xf32>
    %8 = vector.multi_reduction <add>, %7, %cst_6 [1] : vector<16x128xf32> to vector<16xf32>
    %9 = vector.shape_cast %8 : vector<16xf32> to vector<16x1xf32>
    %cst_7 = arith.constant 1.280000e+02 : f32
    %10 = vector.broadcast %cst_7 : f32 to vector<16x1xf32>
    %11 = arith.divf %9, %10 : vector<16x1xf32>
    %12 = arith.mulf %6, %6 : vector<16x1xf32>
    %13 = arith.subf %11, %12 : vector<16x1xf32>
    %cst_8 = arith.constant 0.000000e+00 : f32
    %14 = vector.broadcast %cst_8 : f32 to vector<16x1xf32>
    %15 = arith.maximumf %13, %14 : vector<16x1xf32>
    %cst_9 = arith.constant 9.99999974E-6 : f32
    %16 = vector.broadcast %cst_9 : f32 to vector<16x1xf32>
    %17 = arith.addf %15, %16 : vector<16x1xf32>
    %18 = math.rsqrt %17 : vector<16x1xf32>
    %19 = vector.broadcast %6 : vector<16x1xf32> to vector<16x128xf32>
    %20 = arith.subf %0, %19 : vector<16x128xf32>
    %21 = vector.broadcast %18 : vector<16x1xf32> to vector<16x128xf32>
    %22 = arith.mulf %20, %21 : vector<16x128xf32>
    %23 = vector.broadcast %1 : vector<1x128xf32> to vector<16x128xf32>
    %24 = arith.mulf %22, %23 : vector<16x128xf32>
    %25 = vector.broadcast %2 : vector<1x128xf32> to vector<16x128xf32>
    %26 = arith.addf %24, %25 : vector<16x128xf32>
    %c0_10 = arith.constant 0 : index
    %c0_11 = arith.constant 0 : index
    %27 = vector.load %arg2[%c0_10, %c0_11] : memref<16x1xf32, #tpu.memory_space<vmem>>, vector<16x1xf32>
    %28 = vector.broadcast %27 : vector<16x1xf32> to vector<16x128xf32>
    %29 = arith.mulf %26, %28 : vector<16x128xf32>
    %c0_12 = arith.constant 0 : index
    %c0_13 = arith.constant 0 : index
    %30 = vector.load %arg5[%c0_12, %c0_13] : memref<16x128xf32, #tpu.memory_space<vmem>>, vector<16x128xf32>
    tpu.vector_store %arg5[%c0_12, %c0_13], %29 {strides = array<i32>} : memref<16x128xf32, #tpu.memory_space<vmem>>, vector<16x128xf32>,
    return
  }
  func.func @transform_0(%arg0: i32) -> (i32, i32) {
    %c0_i32 = arith.constant 0 : i32
    %c0_i32_0 = arith.constant 0 : i32
    return %arg0, %c0_i32 : i32, i32
  }
  func.func @transform_1(%arg0: i32) -> (i32, i32) {
    %c0_i32 = arith.constant 0 : i32
    %c0_i32_0 = arith.constant 0 : i32
    return %arg0, %c0_i32 : i32, i32
  }
  func.func @transform_2(%arg0: i32) -> (i32, i32) {
    %c0_i32 = arith.constant 0 : i32
    %c0_i32_0 = arith.constant 0 : i32
    %c0_i32_1 = arith.constant 0 : i32
    return %c0_i32, %c0_i32_0 : i32, i32
  }
  func.func @transform_3(%arg0: i32) -> (i32, i32) {
    %c0_i32 = arith.constant 0 : i32
    %c0_i32_0 = arith.constant 0 : i32
    %c0_i32_1 = arith.constant 0 : i32
    return %c0_i32, %c0_i32_0 : i32, i32
  }
  func.func @transform_4(%arg0: i32) -> (i32, i32) {
    %c0_i32 = arith.constant 0 : i32
    %c0_i32_0 = arith.constant 0 : i32
    return %arg0, %c0_i32 : i32, i32
  }
}

</mosaic_0001>

<llo_original>
// kernel: tpu_custom_call.1
$region0: #{tpu_custom_call.1}
  #allocation0 [shape = 'u32[]', space=smem, size = 0x4, offset = 0x4, fixed_abs, tag = 'smem constant byte address 0x4 - core index']
  #allocation1 [shape = 'u32[144,128]{1,0:T(1,128)}', space=vmem, size = 0x12000, scoped, tag = 'internal scratch']
  %s0 = inlined_call_operand.vmem [shape: f32[16,128], index: 0, kind: input, shape index: {}]
  %s1 = inlined_call_operand.vmem [shape: f32[16,1], index: 1, kind: input, shape index: {}]
  %s2 = inlined_call_operand.vmem [shape: f32[1,128], index: 2, kind: input, shape index: {}]
  %s3 = inlined_call_operand.vmem [shape: f32[1,128], index: 3, kind: input, shape index: {}]
  %s4 = inlined_call_operand.hbm [shape: f32[16,128], index: 4, kind: output, shape index: {}]
  %s5 = sld [smem:[#allocation0]]
  $region26: #{tpu_custom_call.1} parent=0
    _
  %s7 = ssub.s32 1, %s5
  %s8 = scalar_select 0, %s7, %s5
  $region1: #{tpu_custom_call.1} parent=0
    #allocation2 [shape = 'u8[8192]{0}', space=vmem, size = 0x2000, scoped, tag = 'output window, operand 0, single buffered']
    #allocation3 [shape = 's32[1]{0}', space=sflag, size = 0x4, scoped, tag = 'scoped memory for tpu_custom_call.1']
    %9 = vsyncpa [#allocation3], 0
    // Predicated region
    $region2: #{tpu_custom_call.1} parent=1 // pred_check
      _
    $region3: #{tpu_custom_call.1} parent=1 // pred_check_branch
      %11 = sbr.rel (0) target = $region5
    $region4: #{tpu_custom_call.1} parent=1 // pred_region
      _
    $region5: #{tpu_custom_call.1} parent=1 // pred_fallthru
      _
    // Predicated region
    $region6: #{tpu_custom_call.1} parent=1 // pred_check
      _
    $region7: #{tpu_custom_call.1} parent=1 // pred_check_branch
      %13 = sbr.rel (0) target = $region9
    $region8: #{tpu_custom_call.1} parent=1 // pred_region
      _
    $region9: #{tpu_custom_call.1} parent=1 // pred_fallthru
      _
    // Predicated region
    $region10: #{tpu_custom_call.1} parent=1 // pred_check
      _
    $region11: #{tpu_custom_call.1} parent=1 // pred_check_branch
      %15 = sbr.rel (0) target = $region13
    $region12: #{tpu_custom_call.1} parent=1 // pred_region
      _
    $region13: #{tpu_custom_call.1} parent=1 // pred_fallthru
      _
    // Predicated region
    $region14: #{tpu_custom_call.1} parent=1 // pred_check
      _
    $region15: #{tpu_custom_call.1} parent=1 // pred_check_branch
      %17 = sbr.rel (0) target = $region17
    $region16: #{tpu_custom_call.1} parent=1 // pred_region
      _
    $region17: #{tpu_custom_call.1} parent=1 // pred_fallthru
      _
    %v18 = vld [vmem:[%s0] sm:$0xff]
    %v19 = vld [vmem:[%s0 + $0x8] sm:$0xff]
    %v20 = vld [vmem:[%s2] sm:$0x1]
    %v21 = vld [vmem:[%s3] sm:$0x1]
    %22 = vadd.xlane.f32.xlu0 %v18
    %v23 = vpop.xlane.xlu0 %22
    %24 = vadd.xlane.f32.xlu0 %v19
    %v25 = vpop.xlane.xlu0 %24
    %v26 = vrcp.pop 128.0
    %v27 = vmul.f32 %v23, %v26
    %v28 = vmul.f32 %v25, %v26
    %v29 = vmul.f32 %v18, %v18
    %v30 = vmul.f32 %v19, %v19
    %31 = vadd.xlane.f32.xlu0 %v29
    %v32 = vpop.xlane.xlu0 %31
    %33 = vadd.xlane.f32.xlu0 %v30
    %v34 = vpop.xlane.xlu0 %33
    %v35 = vmul.f32 %v32, %v26
    %v36 = vmul.f32 %v34, %v26
    %v37 = vmul.f32 %v27, %v27
    %v38 = vmul.f32 %v28, %v28
    %v39 = vsub.f32 %v35, %v37
    %v40 = vsub.f32 %v36, %v38
    %v41 = vmax.f32 %v39, 0.0
    %v42 = vmax.f32 %v40, 0.0
    %v43 = vadd.f32 %v41, 1e-05
    %v44 = vadd.f32 %v42, 1e-05
    %v45 = vrsqrt.pop %v43
    %v46 = vrsqrt.pop %v44
    %v47 = vsub.f32 %v18, %v27
    %v48 = vsub.f32 %v19, %v28
    %v49 = vmul.f32 %v47, %v45
    %v50 = vmul.f32 %v48, %v46
    %v52 = vlaneseq
    %v53 = vshrl.u32 %v52, 7
    %v54 = vsub.s32 0, %v53
    %v55 = vrot.slane %v20, %v54
    %v57 = vmul.f32 %v49, %v55
    %v58 = vmul.f32 %v50, %v55
    %v60 = vlaneseq
    %v61 = vshrl.u32 %v60, 7
    %v62 = vsub.s32 0, %v61
    %v63 = vrot.slane %v21, %v62
    %v65 = vadd.f32 %v57, %v63
    %v66 = vadd.f32 %v58, %v63
    %v67 = vld [vmem:[%s1] sm:$0xff]
    %v68 = vld [vmem:[%s1 + $0x8] sm:$0xff]
    %70 = vset.pattern.permute.xlu0 0
    %71 = vperm.xlu0 %70, %v67
    %v72 = vpop.permute.xlu0 %71
    %75 = vset.pattern.permute.xlu0 0
    %76 = vperm.xlu0 %75, %v68
    %v77 = vpop.permute.xlu0 %76
    %v79 = vmul.f32 %v65, %v72
    %v80 = vmul.f32 %v66, %v77
    %81 = vst [vmem:[#allocation2] sm:$0xff] %v79
    %82 = vst [vmem:[#allocation2 + $0x8] sm:$0xff] %v80
    // Predicated region
    $region18: #{tpu_custom_call.1} parent=1 // pred_check
      _
    $region19: #{tpu_custom_call.1} parent=1 // pred_check_branch
      %84 = sbr.rel (0) target = $region21
    $region20: #{tpu_custom_call.1} parent=1 // pred_region
      %s86 = ssub.s32 256, 256
      %87 = vsyncadd [#allocation3], %s86
      %s88 = sshll.u32 [#allocation2], 4
      %s89 = int_to_ptr.vmem [resolvable:$true] %s88
      %94 = dma.vmem_to_hbm [thread:$0]  %s89, 256, %s4, [#allocation3], 128, 128, 8
    $region21: #{tpu_custom_call.1} parent=1 // pred_fallthru
      _
    // Predicated region
    $region22: #{tpu_custom_call.1} parent=1 // pred_check
      _
    $region23: #{tpu_custom_call.1} parent=1 // pred_check_branch
      %96 = sbr.rel (0) target = $region25
    $region24: #{tpu_custom_call.1} parent=1 // pred_region
      %97 = dma.done [#allocation3], 256
    $region25: #{tpu_custom_call.1} parent=1 // pred_fallthru
      _
    %98 = vsyncpa [#allocation3], 1

</llo_original>
